<compile_context>
chip_gen: v5e
topology: v5e:2x2
jax: 0.10.0
libtpu: 0.0.40
codegen_flags: <defaults>
</compile_context>

<pallas_src>
import jax
import jax.numpy as jnp
from jax.experimental import pallas as pl
from jax.experimental.pallas import tpu as pltpu


def _crop_dma_kernel(x_hbm, o_hbm, sems):
    """Per-channel HBM->HBM prefix copy.

    x_hbm: (C, H*W) in HBM, o_hbm: (C, W*W) in HBM (H > W, so W*W < H*W).
    Each channel's crop is a contiguous prefix of its flattened row, so the whole op is
    C independent contiguous DMAs.  All DMAs are started before any wait so they overlap;
    there is no VMEM staging and no vector load/store work at all.
    """
    c = x_hbm.shape[0]
    out_len = o_hbm.shape[1]
    copies = [
        pltpu.make_async_copy(
            x_hbm.at[ci, pl.ds(0, out_len)],   # reads only the cropped prefix (< in_len)
            o_hbm.at[ci, pl.ds(0, out_len)],
            sems.at[ci],
        )
        for ci in range(c)
    ]
    for cp in copies:   # image channel counts are tiny (3-4): keep every DMA outstanding
        cp.start()
    for cp in copies:
        cp.wait()


def crop_top_square(image: jax.Array, *, small_fallback_bytes: int = 1 << 20) -> jax.Array:
    """JAX/Pallas equivalent of CropTopSquare.forward for a CHW image.

    H <= W: identity (input returned directly).  H > W: top-square crop -> (C, W, W).
    """
    if image.ndim != 3:
        raise ValueError(f"expected a CHW image, got shape {image.shape}")
    c, h, w = image.shape

    # Identity case: PyTorch returns the input tensor unchanged -> no kernel launch.
    if h <= w:
        return image

    out_h = w
    out_len = out_h * w          # cropped region = contiguous prefix of each channel row
    in_len = h * w
    # Invariant the DMA relies on: we only read the first out_len elements of each
    # in_len-long channel row, and out_len < in_len because h > w.
    assert out_len <= in_len, (out_len, in_len)

    itemsize = jnp.dtype(image.dtype).itemsize
    # Small-input fallback: fixed kernel launch overhead dominates for tiny crops; a plain
    # XLA slice is a single DMA-backed copy with no kernel ramp.
    if c * out_len * itemsize <= small_fallback_bytes:
        return image[:, :out_h, :]

    # Flatten each channel so the crop becomes a contiguous prefix copy per channel.
    x_flat = image.reshape(c, in_len)

    out_flat = pl.pallas_call(
        _crop_dma_kernel,
        out_shape=jax.ShapeDtypeStruct((c, out_len), image.dtype),
        # Both operands stay in HBM: the kernel is a pure DMA, no VMEM staging and no
        # grid — so no per-step overhead and no VMEM limits to tune per generation.
        in_specs=[pl.BlockSpec(memory_space=pl.ANY)],
        out_specs=pl.BlockSpec(memory_space=pl.ANY),
        scratch_shapes=[pltpu.SemaphoreType.DMA((c,))],
    )(x_flat)

    return out_flat.reshape(c, out_h, w)


if __name__ == "__main__":
    key = jax.random.PRNGKey(0)
    k1, k2, k3, k4 = jax.random.split(key, 4)

    # Case 1: H > W -> crop top square (C, W, W) through the DMA kernel (fallback disabled
    # so the Pallas path actually executes at this small test size).
    img_tall = jax.random.normal(k1, (4, 24, 16), dtype=jnp.float32)
    out_tall = jax.block_until_ready(crop_top_square(img_tall, small_fallback_bytes=0))
    assert out_tall.shape == (4, 16, 16), out_tall.shape
    assert jnp.array_equal(out_tall, img_tall[:, :16, :]), "tall-image crop mismatch"

    # Case 2: H <= W -> identity (returned directly, no kernel launch).
    img_wide = jax.random.normal(k2, (4, 16, 16), dtype=jnp.float32)
    out_wide = jax.block_until_ready(crop_top_square(img_wide))
    assert out_wide.shape == (4, 16, 16), out_wide.shape
    assert jnp.array_equal(out_wide, img_wide), "wide-image identity mismatch"

    # Case 3: bf16 through the DMA kernel (byte-copy is dtype-agnostic).
    img_bf16 = jax.random.normal(k3, (3, 40, 24), dtype=jnp.bfloat16)
    out_bf16 = jax.block_until_ready(crop_top_square(img_bf16, small_fallback_bytes=0))
    assert out_bf16.shape == (3, 24, 24), out_bf16.shape
    assert jnp.array_equal(out_bf16, img_bf16[:, :24, :]), "bf16 crop mismatch"

    # Case 4: small-input fallback path (default threshold) -> plain XLA slice.
    img_small = jax.random.normal(k4, (3, 20, 12), dtype=jnp.float32)
    out_small = jax.block_until_ready(crop_top_square(img_small))
    assert out_small.shape == (3, 12, 12), out_small.shape
    assert jnp.array_equal(out_small, img_small[:, :12, :]), "fallback crop mismatch"

    print("KERNEL_OK")
</pallas_src>

<mosaic_0001>
module attributes {stable_mosaic.version = 11 : i64} {
  func.func @_crop_dma_kernel(%arg0: memref<4x384xf32, #tpu.memory_space<any>>, %arg1: memref<4x256xf32, #tpu.memory_space<any>>, %arg2: memref<4x!tpu.dma_semaphore, #tpu.memory_space<semaphore_mem>>) attributes {dimension_semantics = [], scalar_prefetch = 0 : i64, scratch_operands = 1 : i64, tpu.core_type = #tpu.core_type<tc>} {
    %c0_i32 = arith.constant 0 : i32
    %c0_i32_0 = arith.constant 0 : i32
    %c0_i32_1 = arith.constant 0 : i32
    %c0_i32_2 = arith.constant 0 : i32
    %0 = tpu.memref_slice %arg0[%c0_i32, %c0_i32_2] : memref<4x384xf32, #tpu.memory_space<any>> -> memref<1x256xf32, #tpu.memory_space<any>>
    %1 = tpu.memref_squeeze %0 : memref<1x256xf32, #tpu.memory_space<any>> -> memref<256xf32, #tpu.memory_space<any>>
    %c0_i32_3 = arith.constant 0 : i32
    %2 = tpu.memref_slice %arg1[%c0_i32_0, %c0_i32_3] : memref<4x256xf32, #tpu.memory_space<any>> -> memref<1x256xf32, #tpu.memory_space<any>>
    %3 = tpu.memref_squeeze %2 : memref<1x256xf32, #tpu.memory_space<any>> -> memref<256xf32, #tpu.memory_space<any>>
    %4 = tpu.memref_slice %arg2[%c0_i32_1] : memref<4x!tpu.dma_semaphore, #tpu.memory_space<semaphore_mem>> -> memref<1x!tpu.dma_semaphore, #tpu.memory_space<semaphore_mem>>
    %5 = tpu.memref_squeeze %4 : memref<1x!tpu.dma_semaphore, #tpu.memory_space<semaphore_mem>> -> memref<!tpu.dma_semaphore, #tpu.memory_space<semaphore_mem>>
    tpu.enqueue_dma source(%1 : memref<256xf32, #tpu.memory_space<any>>) target(%3 : memref<256xf32, #tpu.memory_space<any>>) target_semaphore(%5 : memref<!tpu.dma_semaphore, #tpu.memory_space<semaphore_mem>>)
    %c1_i32 = arith.constant 1 : i32
    %c1_i32_4 = arith.constant 1 : i32
    %c1_i32_5 = arith.constant 1 : i32
    %c0_i32_6 = arith.constant 0 : i32
    %6 = tpu.memref_slice %arg0[%c1_i32, %c0_i32_6] : memref<4x384xf32, #tpu.memory_space<any>> -> memref<1x256xf32, #tpu.memory_space<any>>
    %7 = tpu.memref_squeeze %6 : memref<1x256xf32, #tpu.memory_space<any>> -> memref<256xf32, #tpu.memory_space<any>>
    %c0_i32_7 = arith.constant 0 : i32
    %8 = tpu.memref_slice %arg1[%c1_i32_4, %c0_i32_7] : memref<4x256xf32, #tpu.memory_space<any>> -> memref<1x256xf32, #tpu.memory_space<any>>
    %9 = tpu.memref_squeeze %8 : memref<1x256xf32, #tpu.memory_space<any>> -> memref<256xf32, #tpu.memory_space<any>>
    %10 = tpu.memref_slice %arg2[%c1_i32_5] : memref<4x!tpu.dma_semaphore, #tpu.memory_space<semaphore_mem>> -> memref<1x!tpu.dma_semaphore, #tpu.memory_space<semaphore_mem>>
    %11 = tpu.memref_squeeze %10 : memref<1x!tpu.dma_semaphore, #tpu.memory_space<semaphore_mem>> -> memref<!tpu.dma_semaphore, #tpu.memory_space<semaphore_mem>>
    tpu.enqueue_dma source(%7 : memref<256xf32, #tpu.memory_space<any>>) target(%9 : memref<256xf32, #tpu.memory_space<any>>) target_semaphore(%11 : memref<!tpu.dma_semaphore, #tpu.memory_space<semaphore_mem>>)
    %c2_i32 = arith.constant 2 : i32
    %c2_i32_8 = arith.constant 2 : i32
    %c2_i32_9 = arith.constant 2 : i32
    %c0_i32_10 = arith.constant 0 : i32
    %12 = tpu.memref_slice %arg0[%c2_i32, %c0_i32_10] : memref<4x384xf32, #tpu.memory_space<any>> -> memref<1x256xf32, #tpu.memory_space<any>>
    %13 = tpu.memref_squeeze %12 : memref<1x256xf32, #tpu.memory_space<any>> -> memref<256xf32, #tpu.memory_space<any>>
    %c0_i32_11 = arith.constant 0 : i32
    %14 = tpu.memref_slice %arg1[%c2_i32_8, %c0_i32_11] : memref<4x256xf32, #tpu.memory_space<any>> -> memref<1x256xf32, #tpu.memory_space<any>>
    %15 = tpu.memref_squeeze %14 : memref<1x256xf32, #tpu.memory_space<any>> -> memref<256xf32, #tpu.memory_space<any>>
    %16 = tpu.memref_slice %arg2[%c2_i32_9] : memref<4x!tpu.dma_semaphore, #tpu.memory_space<semaphore_mem>> -> memref<1x!tpu.dma_semaphore, #tpu.memory_space<semaphore_mem>>
    %17 = tpu.memref_squeeze %16 : memref<1x!tpu.dma_semaphore, #tpu.memory_space<semaphore_mem>> -> memref<!tpu.dma_semaphore, #tpu.memory_space<semaphore_mem>>
    tpu.enqueue_dma source(%13 : memref<256xf32, #tpu.memory_space<any>>) target(%15 : memref<256xf32, #tpu.memory_space<any>>) target_semaphore(%17 : memref<!tpu.dma_semaphore, #tpu.memory_space<semaphore_mem>>)
    %c3_i32 = arith.constant 3 : i32
    %c3_i32_12 = arith.constant 3 : i32
    %c3_i32_13 = arith.constant 3 : i32
    %c0_i32_14 = arith.constant 0 : i32
    %18 = tpu.memref_slice %arg0[%c3_i32, %c0_i32_14] : memref<4x384xf32, #tpu.memory_space<any>> -> memref<1x256xf32, #tpu.memory_space<any>>
    %19 = tpu.memref_squeeze %18 : memref<1x256xf32, #tpu.memory_space<any>> -> memref<256xf32, #tpu.memory_space<any>>
    %c0_i32_15 = arith.constant 0 : i32
    %20 = tpu.memref_slice %arg1[%c3_i32_12, %c0_i32_15] : memref<4x256xf32, #tpu.memory_space<any>> -> memref<1x256xf32, #tpu.memory_space<any>>
    %21 = tpu.memref_squeeze %20 : memref<1x256xf32, #tpu.memory_space<any>> -> memref<256xf32, #tpu.memory_space<any>>
    %22 = tpu.memref_slice %arg2[%c3_i32_13] : memref<4x!tpu.dma_semaphore, #tpu.memory_space<semaphore_mem>> -> memref<1x!tpu.dma_semaphore, #tpu.memory_space<semaphore_mem>>
    %23 = tpu.memref_squeeze %22 : memref<1x!tpu.dma_semaphore, #tpu.memory_space<semaphore_mem>> -> memref<!tpu.dma_semaphore, #tpu.memory_space<semaphore_mem>>
    tpu.enqueue_dma source(%19 : memref<256xf32, #tpu.memory_space<any>>) target(%21 : memref<256xf32, #tpu.memory_space<any>>) target_semaphore(%23 : memref<!tpu.dma_semaphore, #tpu.memory_space<semaphore_mem>>)
    %c0_i32_16 = arith.constant 0 : i32
    %c0_i32_17 = arith.constant 0 : i32
    %c0_i32_18 = arith.constant 0 : i32
    %c0_i32_19 = arith.constant 0 : i32
    %24 = tpu.memref_slice %arg0[%c0_i32_16, %c0_i32_19] : memref<4x384xf32, #tpu.memory_space<any>> -> memref<1x256xf32, #tpu.memory_space<any>>
    %25 = tpu.memref_squeeze %24 : memref<1x256xf32, #tpu.memory_space<any>> -> memref<256xf32, #tpu.memory_space<any>>
    %c0_i32_20 = arith.constant 0 : i32
    %26 = tpu.memref_slice %arg1[%c0_i32_17, %c0_i32_20] : memref<4x256xf32, #tpu.memory_space<any>> -> memref<1x256xf32, #tpu.memory_space<any>>
    %27 = tpu.memref_squeeze %26 : memref<1x256xf32, #tpu.memory_space<any>> -> memref<256xf32, #tpu.memory_space<any>>
    %28 = tpu.memref_slice %arg2[%c0_i32_18] : memref<4x!tpu.dma_semaphore, #tpu.memory_space<semaphore_mem>> -> memref<1x!tpu.dma_semaphore, #tpu.memory_space<semaphore_mem>>
    %29 = tpu.memref_squeeze %28 : memref<1x!tpu.dma_semaphore, #tpu.memory_space<semaphore_mem>> -> memref<!tpu.dma_semaphore, #tpu.memory_space<semaphore_mem>>
    tpu.wait_dma2 semaphore(%29 : memref<!tpu.dma_semaphore, #tpu.memory_space<semaphore_mem>>) src(%25 : memref<256xf32, #tpu.memory_space<any>>) dst(%27 : memref<256xf32, #tpu.memory_space<any>>)
    %c1_i32_21 = arith.constant 1 : i32
    %c1_i32_22 = arith.constant 1 : i32
    %c1_i32_23 = arith.constant 1 : i32
    %c0_i32_24 = arith.constant 0 : i32
    %30 = tpu.memref_slice %arg0[%c1_i32_21, %c0_i32_24] : memref<4x384xf32, #tpu.memory_space<any>> -> memref<1x256xf32, #tpu.memory_space<any>>
    %31 = tpu.memref_squeeze %30 : memref<1x256xf32, #tpu.memory_space<any>> -> memref<256xf32, #tpu.memory_space<any>>
    %c0_i32_25 = arith.constant 0 : i32
    %32 = tpu.memref_slice %arg1[%c1_i32_22, %c0_i32_25] : memref<4x256xf32, #tpu.memory_space<any>> -> memref<1x256xf32, #tpu.memory_space<any>>
    %33 = tpu.memref_squeeze %32 : memref<1x256xf32, #tpu.memory_space<any>> -> memref<256xf32, #tpu.memory_space<any>>
    %34 = tpu.memref_slice %arg2[%c1_i32_23] : memref<4x!tpu.dma_semaphore, #tpu.memory_space<semaphore_mem>> -> memref<1x!tpu.dma_semaphore, #tpu.memory_space<semaphore_mem>>
    %35 = tpu.memref_squeeze %34 : memref<1x!tpu.dma_semaphore, #tpu.memory_space<semaphore_mem>> -> memref<!tpu.dma_semaphore, #tpu.memory_space<semaphore_mem>>
    tpu.wait_dma2 semaphore(%35 : memref<!tpu.dma_semaphore, #tpu.memory_space<semaphore_mem>>) src(%31 : memref<256xf32, #tpu.memory_space<any>>) dst(%33 : memref<256xf32, #tpu.memory_space<any>>)
    %c2_i32_26 = arith.constant 2 : i32
    %c2_i32_27 = arith.constant 2 : i32
    %c2_i32_28 = arith.constant 2 : i32
    %c0_i32_29 = arith.constant 0 : i32
    %36 = tpu.memref_slice %arg0[%c2_i32_26, %c0_i32_29] : memref<4x384xf32, #tpu.memory_space<any>> -> memref<1x256xf32, #tpu.memory_space<any>>
    %37 = tpu.memref_squeeze %36 : memref<1x256xf32, #tpu.memory_space<any>> -> memref<256xf32, #tpu.memory_space<any>>
    %c0_i32_30 = arith.constant 0 : i32
    %38 = tpu.memref_slice %arg1[%c2_i32_27, %c0_i32_30] : memref<4x256xf32, #tpu.memory_space<any>> -> memref<1x256xf32, #tpu.memory_space<any>>
    %39 = tpu.memref_squeeze %38 : memref<1x256xf32, #tpu.memory_space<any>> -> memref<256xf32, #tpu.memory_space<any>>
    %40 = tpu.memref_slice %arg2[%c2_i32_28] : memref<4x!tpu.dma_semaphore, #tpu.memory_space<semaphore_mem>> -> memref<1x!tpu.dma_semaphore, #tpu.memory_space<semaphore_mem>>
    %41 = tpu.memref_squeeze %40 : memref<1x!tpu.dma_semaphore, #tpu.memory_space<semaphore_mem>> -> memref<!tpu.dma_semaphore, #tpu.memory_space<semaphore_mem>>
    tpu.wait_dma2 semaphore(%41 : memref<!tpu.dma_semaphore, #tpu.memory_space<semaphore_mem>>) src(%37 : memref<256xf32, #tpu.memory_space<any>>) dst(%39 : memref<256xf32, #tpu.memory_space<any>>)
    %c3_i32_31 = arith.constant 3 : i32
    %c3_i32_32 = arith.constant 3 : i32
    %c3_i32_33 = arith.constant 3 : i32
    %c0_i32_34 = arith.constant 0 : i32
    %42 = tpu.memref_slice %arg0[%c3_i32_31, %c0_i32_34] : memref<4x384xf32, #tpu.memory_space<any>> -> memref<1x256xf32, #tpu.memory_space<any>>
    %43 = tpu.memref_squeeze %42 : memref<1x256xf32, #tpu.memory_space<any>> -> memref<256xf32, #tpu.memory_space<any>>
    %c0_i32_35 = arith.constant 0 : i32
    %44 = tpu.memref_slice %arg1[%c3_i32_32, %c0_i32_35] : memref<4x256xf32, #tpu.memory_space<any>> -> memref<1x256xf32, #tpu.memory_space<any>>
    %45 = tpu.memref_squeeze %44 : memref<1x256xf32, #tpu.memory_space<any>> -> memref<256xf32, #tpu.memory_space<any>>
    %46 = tpu.memref_slice %arg2[%c3_i32_33] : memref<4x!tpu.dma_semaphore, #tpu.memory_space<semaphore_mem>> -> memref<1x!tpu.dma_semaphore, #tpu.memory_space<semaphore_mem>>
    %47 = tpu.memref_squeeze %46 : memref<1x!tpu.dma_semaphore, #tpu.memory_space<semaphore_mem>> -> memref<!tpu.dma_semaphore, #tpu.memory_space<semaphore_mem>>
    tpu.wait_dma2 semaphore(%47 : memref<!tpu.dma_semaphore, #tpu.memory_space<semaphore_mem>>) src(%43 : memref<256xf32, #tpu.memory_space<any>>) dst(%45 : memref<256xf32, #tpu.memory_space<any>>)
    return
  }
}

</mosaic_0001>

<llo_original>
// kernel: tpu_custom_call.1
$region0: #{tpu_custom_call.1}
  #allocation0 [shape = 'u32[]', space=smem, size = 0x4, offset = 0x4, fixed_abs, tag = 'smem constant byte address 0x4 - core index']
  #allocation1 [shape = 'u32[72,128]{1,0:T(1,128)}', space=vmem, size = 0x9000, scoped, tag = 'internal scratch']
  #allocation2 [shape = 's32[4]{0}', space=sflag, size = 0x10, scoped, tag = 'scratch operand']
  #allocation3 [shape = 's32[]', space=sflag, size = 0x4, offset = 0, fixed_abs, tag = 'sflag constant byte address 0x0 - dummy sync flag']
  #allocation5 [shape = 's32[]', space=sflag, size = 0x4, offset = 0, fixed_abs, tag = 'sflag constant byte address 0x0 - dummy sync flag']
  #allocation7 [shape = 's32[]', space=sflag, size = 0x4, offset = 0, fixed_abs, tag = 'sflag constant byte address 0x0 - dummy sync flag']
  #allocation9 [shape = 's32[]', space=sflag, size = 0x4, offset = 0, fixed_abs, tag = 'sflag constant byte address 0x0 - dummy sync flag']
  %s0 = inlined_call_operand.hbm [shape: f32[4,384], index: 0, kind: input, shape index: {}]
  %s1 = inlined_call_operand.hbm [shape: f32[4,256], index: 1, kind: output, shape index: {}]
  %s2 = sld [smem:[#allocation0]]
  $region2: #{tpu_custom_call.1} parent=0
    _
  %s4 = ssub.s32 1, %s2
  %s5 = scalar_select 0, %s4, %s2
  $region1: #{tpu_custom_call.1} parent=0
    #allocation4 [shape = 'u32[3]{0}', space=smem, size = 0xc, scoped, tag = 'DMA stride descriptor']
    #allocation6 [shape = 'u32[3]{0}', space=smem, size = 0xc, scoped, tag = 'DMA stride descriptor']
    #allocation8 [shape = 'u32[3]{0}', space=smem, size = 0xc, scoped, tag = 'DMA stride descriptor']
    #allocation10 [shape = 'u32[3]{0}', space=smem, size = 0xc, scoped, tag = 'DMA stride descriptor']
    %s7 = sshll.u32 1, 14
    %s8 = sxor.u32 4294967295, %s7
    %s10 = sshll.u32 %s0, 4
    %s11 = int_to_ptr.hbm [resolvable:$true] %s10
    %s12 = sshll.u32 %s1, 4
    %s13 = int_to_ptr.hbm [resolvable:$true] %s12
    %17 = sst [smem:[#allocation4]] 64
    %s18 = scalar_lea.smem [#allocation4], 1
    %19 = sst [smem:[%s18]] 64
    %s20 = scalar_lea.smem [#allocation4], 2
    %21 = sst [smem:[%s20]] 1
    %23 = dma.general %s11, 32, %s13, [#allocation2], [#allocation3], [#allocation4], 0, 0
    %s24 = scalar_lea.hbm %s0, 1
    %s25 = scalar_lea.hbm %s1, 1
    %s26 = scalar_lea.sflag [#allocation2], 1
    %s28 = sshll.u32 1, 14
    %s29 = sxor.u32 4294967295, %s28
    %s31 = sshll.u32 %s24, 4
    %s32 = int_to_ptr.hbm [resolvable:$true] %s31
    %s33 = sshll.u32 %s25, 4
    %s34 = int_to_ptr.hbm [resolvable:$true] %s33
    %38 = sst [smem:[#allocation6]] 64
    %s39 = scalar_lea.smem [#allocation6], 1
    %40 = sst [smem:[%s39]] 64
    %s41 = scalar_lea.smem [#allocation6], 2
    %42 = sst [smem:[%s41]] 1
    %44 = dma.general %s32, 32, %s34, %s26, [#allocation5], [#allocation6], 0, 0
    %s45 = scalar_lea.hbm %s0, 2
    %s46 = scalar_lea.hbm %s1, 2
    %s47 = scalar_lea.sflag [#allocation2], 2
    %s49 = sshll.u32 1, 14
    %s50 = sxor.u32 4294967295, %s49
    %s52 = sshll.u32 %s45, 4
    %s53 = int_to_ptr.hbm [resolvable:$true] %s52
    %s54 = sshll.u32 %s46, 4
    %s55 = int_to_ptr.hbm [resolvable:$true] %s54
    %59 = sst [smem:[#allocation8]] 64
    %s60 = scalar_lea.smem [#allocation8], 1
    %61 = sst [smem:[%s60]] 64
    %s62 = scalar_lea.smem [#allocation8], 2
    %63 = sst [smem:[%s62]] 1
    %65 = dma.general %s53, 32, %s55, %s47, [#allocation7], [#allocation8], 0, 0
    %s66 = scalar_lea.hbm %s0, 3
    %s67 = scalar_lea.hbm %s1, 3
    %s68 = scalar_lea.sflag [#allocation2], 3
    %s70 = sshll.u32 1, 14
    %s71 = sxor.u32 4294967295, %s70
    %s73 = sshll.u32 %s66, 4
    %s74 = int_to_ptr.hbm [resolvable:$true] %s73
    %s75 = sshll.u32 %s67, 4
    %s76 = int_to_ptr.hbm [resolvable:$true] %s75
    %80 = sst [smem:[#allocation10]] 64
    %s81 = scalar_lea.smem [#allocation10], 1
    %82 = sst [smem:[%s81]] 64
    %s83 = scalar_lea.smem [#allocation10], 2
    %84 = sst [smem:[%s83]] 1
    %86 = dma.general %s74, 32, %s76, %s68, [#allocation9], [#allocation10], 0, 0
    %88 = dma.done [#allocation2], 32
    %90 = dma.done %s26, 32
    %92 = dma.done %s47, 32
    %94 = dma.done %s68, 32
  %95 = vsyncmov [#allocation2]
  %s96 = vpop.sfrf %95
  %p97 = scmp.eq.s32.totalorder %s96, 0
  %p98 = pneg %p97
  %100 = shalt.err (%p98)
  %s101 = scalar_lea.sflag [#allocation2], 1
  %102 = vsyncmov %s101
  %s103 = vpop.sfrf %102
  %p104 = scmp.eq.s32.totalorder %s103, 0
  %p105 = pneg %p104
  %107 = shalt.err (%p105)
  %s108 = scalar_lea.sflag [#allocation2], 2
  %109 = vsyncmov %s108
  %s110 = vpop.sfrf %109
  %p111 = scmp.eq.s32.totalorder %s110, 0
  %p112 = pneg %p111
  %114 = shalt.err (%p112)
  %s115 = scalar_lea.sflag [#allocation2], 3
  %116 = vsyncmov %s115
  %s117 = vpop.sfrf %116
  %p118 = scmp.eq.s32.totalorder %s117, 0
  %p119 = pneg %p118
  %121 = shalt.err (%p119)

</llo_original>
